<compile_context>
chip_gen: v6e
topology: v6e:2x2x1
jax: 0.10.0
libtpu: 0.0.40
codegen_flags: <defaults>
</compile_context>

<pallas_src>
import functools
import math

import jax
import jax.numpy as jnp
from jax import lax
from jax.experimental import pallas as pl
from jax.experimental.pallas import tpu as pltpu


def _ulinear_kernel(mean_ref, var_ref, w_ref, b_ref, omean_ref, ovar_ref,
                    *, k_rem, tk):
    """One (i, j, k) grid step of the fused mean/variance matmul.

    mean_ref, var_ref : (tm, tk)  bf16
    w_ref             : (tn, tk)  bf16   (native (N, K) layout -> x @ W^T)
    b_ref             : (1,  tn)  f32
    omean_ref/ovar_ref: (tm, tn)  f32    resident accumulators across k
    """
    k = pl.program_id(2)

    # k == 0: initialize the resident output blocks (bias for the mean path,
    # zeros for the variance path).  k is the last grid axis and "arbitrary".
    @pl.when(k == 0)
    def _():
        omean_ref[...] = jnp.broadcast_to(b_ref[...], omean_ref.shape)
        ovar_ref[...] = jnp.zeros_like(ovar_ref)

    m = mean_ref[...]
    v = var_ref[...]
    w = w_ref[...]

    if k_rem:
        # Ragged K: on the last reduction step zero the K-tail of BOTH the
        # activations and the weights, so out-of-bounds garbage in the edge
        # blocks contributes exactly 0 (never 0 * NaN/Inf).
        is_last = k == pl.num_programs(2) - 1
        limit = jnp.where(is_last, k_rem, tk)
        keep = lax.broadcasted_iota(jnp.int32, (1, tk), 1) < limit
        zero = jnp.zeros((), m.dtype)
        m = jnp.where(keep, m, zero)
        v = jnp.where(keep, v, zero)
        w = jnp.where(keep, w, zero)

    # Contract the last dims of both operands: (tm, tk) x (tn, tk)^T -> (tm, tn).
    dnums = (((1,), (1,)), ((), ()))
    omean_ref[...] += lax.dot_general(m, w, dnums,
                                      preferred_element_type=jnp.float32)
    ovar_ref[...] += lax.dot_general(v, w * w, dnums,
                                     preferred_element_type=jnp.float32)


def _round_up(x, m):
    return (x + m - 1) // m * m


def ulinear(mean, var, weight, bias, *, tm=512, tn=512, tk=1024):
    """Pallas ULinear forward.

    mean, var : (..., K) arrays
    weight    : (N, K)   -- PyTorch nn.Linear layout (NOT transposed)
    bias      : (N,)
    returns (out_mean, out_var), each (..., N) float32.
    """
    assert mean.shape == var.shape
    lead = mean.shape[:-1]
    K = mean.shape[-1]
    N, Kw = weight.shape
    assert Kw == K, "weight.shape[1] must match the input feature dim"

    M = math.prod(lead) if lead else 1

    # bf16 operands for the MXU; bias stays f32 (added into the f32 accumulator).
    mean2 = mean.reshape(M, K).astype(jnp.bfloat16)
    var2 = var.reshape(M, K).astype(jnp.bfloat16)
    w2 = weight.astype(jnp.bfloat16)                # (N, K), no transpose
    b2 = bias.reshape(1, N).astype(jnp.float32)

    # Tile selection: full-extent block when a dim fits in one tile (always
    # layout-legal, zero padding); otherwise an aligned tile + cdiv grid with
    # partial edge blocks (no wrapper-side jnp.pad of the activations).
    def tiles(dim, target):
        if dim <= target:
            return dim, 1
        return target, pl.cdiv(dim, target)

    tm_, gm = tiles(M, tm)
    tn_, gn = tiles(N, tn)
    tk_, gk = tiles(K, tk)

    # Megacore (v7x): make sure the parallel axes have >=2 blocks when N allows,
    # otherwise small-M (inference) shapes run on a single TensorCore.
    if gm * gn == 1 and N >= 256:
        tn_ = _round_up(pl.cdiv(N, 2), 128)
        gn = pl.cdiv(N, tn_)

    k_rem = K % tk_          # 0 unless K > tk and ragged

    kernel = functools.partial(_ulinear_kernel, k_rem=k_rem, tk=tk_)

    omean, ovar = pl.pallas_call(
        kernel,
        out_shape=(jax.ShapeDtypeStruct((M, N), jnp.float32),
                   jax.ShapeDtypeStruct((M, N), jnp.float32)),
        grid=(gm, gn, gk),
        in_specs=[
            pl.BlockSpec((tm_, tk_), lambda i, j, k: (i, k)),   # mean (bf16)
            pl.BlockSpec((tm_, tk_), lambda i, j, k: (i, k)),   # var  (bf16)
            pl.BlockSpec((tn_, tk_), lambda i, j, k: (j, k)),   # W (N,K) (bf16)
            pl.BlockSpec((1, tn_),   lambda i, j, k: (0, j)),   # bias (f32)
        ],
        out_specs=(pl.BlockSpec((tm_, tn_), lambda i, j, k: (i, j)),
                   pl.BlockSpec((tm_, tn_), lambda i, j, k: (i, j))),
        compiler_params=pltpu.CompilerParams(
            dimension_semantics=("parallel", "parallel", "arbitrary"),
            vmem_limit_bytes=32 * 1024 * 1024),
    )(mean2, var2, w2, b2)

    out_shape = (*lead, N)
    return omean.reshape(out_shape), ovar.reshape(out_shape)


if __name__ == "__main__":
    key = jax.random.PRNGKey(0)
    k1, k2, k3, k4 = jax.random.split(key, 4)

    # Small shapes implied by the module: batch=2, seq=8, in=32, out=32.
    B, S, IN, OUT = 2, 8, 32, 32
    mean = jax.random.normal(k1, (B, S, IN), dtype=jnp.float32)
    var = jax.random.uniform(k2, (B, S, IN), dtype=jnp.float32)

    bound = 1.0 / math.sqrt(IN)          # nn.Linear default init range
    weight = jax.random.uniform(k3, (OUT, IN), minval=-bound, maxval=bound,
                                dtype=jnp.float32)
    bias = jax.random.uniform(k4, (OUT,), minval=-bound, maxval=bound,
                              dtype=jnp.float32)

    out_mean, out_var = ulinear(mean, var, weight, bias)
    jax.block_until_ready((out_mean, out_var))

    # Reference: ULinear.forward (f32)
    ref_mean = jnp.einsum("bsk,nk->bsn", mean, weight) + bias
    ref_var = jnp.einsum("bsk,nk->bsn", var, weight ** 2)

    assert out_mean.shape == (B, S, OUT) and out_var.shape == (B, S, OUT)
    # bf16 operands / f32 accumulation -> slightly looser tolerances.
    assert jnp.allclose(out_mean, ref_mean, atol=5e-2, rtol=5e-2)
    assert jnp.allclose(out_var, ref_var, atol=5e-2, rtol=5e-2)

    print("KERNEL_OK")
</pallas_src>

<mosaic_0001>
module attributes {stable_mosaic.version = 11 : i64} {
  func.func @_ulinear_kernel(%arg0: i32, %arg1: i32, %arg2: i32, %arg3: memref<16x32xbf16, #tpu.memory_space<vmem>>, %arg4: memref<16x32xbf16, #tpu.memory_space<vmem>>, %arg5: memref<32x32xbf16, #tpu.memory_space<vmem>>, %arg6: memref<1x32xf32, #tpu.memory_space<vmem>>, %arg7: memref<16x32xf32, #tpu.memory_space<vmem>>, %arg8: memref<16x32xf32, #tpu.memory_space<vmem>>) attributes {dimension_semantics = [#tpu.dimension_semantics<parallel>, #tpu.dimension_semantics<parallel>, #tpu.dimension_semantics<arbitrary>], iteration_bounds = array<i64: 1, 1, 1>, scalar_prefetch = 0 : i64, scratch_operands = 0 : i64, tpu.core_type = #tpu.core_type<tc>, window_params = [{transform_indices = @transform_0, window_bounds = array<i64: 16, 32>}, {transform_indices = @transform_1, window_bounds = array<i64: 16, 32>}, {transform_indices = @transform_2, window_bounds = array<i64: 32, 32>}, {transform_indices = @transform_3, window_bounds = array<i64: 1, 32>}, {transform_indices = @transform_4, window_bounds = array<i64: 16, 32>}, {transform_indices = @transform_5, window_bounds = array<i64: 16, 32>}]} {
    %c0_i32 = arith.constant 0 : i32
    %0 = arith.cmpi eq, %arg2, %c0_i32 : i32
    %1 = arith.extui %0 : i1 to i32
    %c0_i32_0 = arith.constant 0 : i32
    %2 = arith.cmpi ne, %1, %c0_i32_0 : i32
    scf.if %2 {
      %c0_15 = arith.constant 0 : index
      %c0_16 = arith.constant 0 : index
      %15 = vector.load %arg6[%c0_15, %c0_16] : memref<1x32xf32, #tpu.memory_space<vmem>>, vector<1x32xf32>
      %16 = vector.shape_cast %15 : vector<1x32xf32> to vector<1x32xf32>
      %17 = vector.broadcast %16 : vector<1x32xf32> to vector<16x32xf32>
      %c0_17 = arith.constant 0 : index
      %c0_18 = arith.constant 0 : index
      %18 = vector.load %arg7[%c0_17, %c0_18] : memref<16x32xf32, #tpu.memory_space<vmem>>, vector<16x32xf32>
      tpu.vector_store %arg7[%c0_17, %c0_18], %17 {strides = array<i32>} : memref<16x32xf32, #tpu.memory_space<vmem>>, vector<16x32xf32>,
      %cst_19 = arith.constant 0.000000e+00 : f32
      %19 = vector.broadcast %cst_19 : f32 to vector<16x32xf32>
      %c0_20 = arith.constant 0 : index
      %c0_21 = arith.constant 0 : index
      %20 = vector.load %arg8[%c0_20, %c0_21] : memref<16x32xf32, #tpu.memory_space<vmem>>, vector<16x32xf32>
      tpu.vector_store %arg8[%c0_20, %c0_21], %19 {strides = array<i32>} : memref<16x32xf32, #tpu.memory_space<vmem>>, vector<16x32xf32>,
    } else {
    }
    %c0 = arith.constant 0 : index
    %c0_1 = arith.constant 0 : index
    %3 = vector.load %arg3[%c0, %c0_1] : memref<16x32xbf16, #tpu.memory_space<vmem>>, vector<16x32xbf16>
    %c0_2 = arith.constant 0 : index
    %c0_3 = arith.constant 0 : index
    %4 = vector.load %arg4[%c0_2, %c0_3] : memref<16x32xbf16, #tpu.memory_space<vmem>>, vector<16x32xbf16>
    %c0_4 = arith.constant 0 : index
    %c0_5 = arith.constant 0 : index
    %5 = vector.load %arg5[%c0_4, %c0_5] : memref<32x32xbf16, #tpu.memory_space<vmem>>, vector<32x32xbf16>
    %c0_6 = arith.constant 0 : index
    %c0_7 = arith.constant 0 : index
    %6 = vector.load %arg7[%c0_6, %c0_7] : memref<16x32xf32, #tpu.memory_space<vmem>>, vector<16x32xf32>
    %cst = arith.constant dense<0.000000e+00> : vector<16x32xf32>
    %7 = tpu.matmul %3, %5, %cst {dimension_numbers = #tpu.dot_dimension_numbers<[1], [1], [0], [0], [0, 0, 1, 0], [], []>} : vector<16x32xbf16>, vector<32x32xbf16>, vector<16x32xf32> -> vector<16x32xf32>
    %8 = arith.addf %6, %7 : vector<16x32xf32>
    %c0_8 = arith.constant 0 : index
    %c0_9 = arith.constant 0 : index
    %9 = vector.load %arg7[%c0_8, %c0_9] : memref<16x32xf32, #tpu.memory_space<vmem>>, vector<16x32xf32>
    tpu.vector_store %arg7[%c0_8, %c0_9], %8 {strides = array<i32>} : memref<16x32xf32, #tpu.memory_space<vmem>>, vector<16x32xf32>,
    %c0_10 = arith.constant 0 : index
    %c0_11 = arith.constant 0 : index
    %10 = vector.load %arg8[%c0_10, %c0_11] : memref<16x32xf32, #tpu.memory_space<vmem>>, vector<16x32xf32>
    %11 = arith.mulf %5, %5 : vector<32x32xbf16>
    %cst_12 = arith.constant dense<0.000000e+00> : vector<16x32xf32>
    %12 = tpu.matmul %4, %11, %cst_12 {dimension_numbers = #tpu.dot_dimension_numbers<[1], [1], [0], [0], [0, 0, 1, 0], [], []>} : vector<16x32xbf16>, vector<32x32xbf16>, vector<16x32xf32> -> vector<16x32xf32>
    %13 = arith.addf %10, %12 : vector<16x32xf32>
    %c0_13 = arith.constant 0 : index
    %c0_14 = arith.constant 0 : index
    %14 = vector.load %arg8[%c0_13, %c0_14] : memref<16x32xf32, #tpu.memory_space<vmem>>, vector<16x32xf32>
    tpu.vector_store %arg8[%c0_13, %c0_14], %13 {strides = array<i32>} : memref<16x32xf32, #tpu.memory_space<vmem>>, vector<16x32xf32>,
    return
  }
  func.func @transform_0(%arg0: i32, %arg1: i32, %arg2: i32) -> (i32, i32) {
    %c0_i32 = arith.constant 0 : i32
    return %arg0, %arg2 : i32, i32
  }
  func.func @transform_1(%arg0: i32, %arg1: i32, %arg2: i32) -> (i32, i32) {
    %c0_i32 = arith.constant 0 : i32
    return %arg0, %arg2 : i32, i32
  }
  func.func @transform_2(%arg0: i32, %arg1: i32, %arg2: i32) -> (i32, i32) {
    %c0_i32 = arith.constant 0 : i32
    return %arg1, %arg2 : i32, i32
  }
  func.func @transform_3(%arg0: i32, %arg1: i32, %arg2: i32) -> (i32, i32) {
    %c0_i32 = arith.constant 0 : i32
    %c0_i32_0 = arith.constant 0 : i32
    return %c0_i32, %arg1 : i32, i32
  }
  func.func @transform_4(%arg0: i32, %arg1: i32, %arg2: i32) -> (i32, i32) {
    %c0_i32 = arith.constant 0 : i32
    return %arg0, %arg1 : i32, i32
  }
  func.func @transform_5(%arg0: i32, %arg1: i32, %arg2: i32) -> (i32, i32) {
    %c0_i32 = arith.constant 0 : i32
    return %arg0, %arg1 : i32, i32
  }
}

</mosaic_0001>

<llo_original>
// kernel: tpu_custom_call.1
$region0: #{tpu_custom_call.1}
  #allocation0 [shape = 'u32[]', space=smem, size = 0x4, offset = 0x4, fixed_abs, tag = 'smem constant byte address 0x4 - core index']
  #allocation1 [shape = 'u32[144,128]{1,0:T(1,128)}', space=vmem, size = 0x12000, scoped, tag = 'internal scratch']
  %s0 = inlined_call_operand.hbm [shape: bf16[16,32], index: 0, kind: input, shape index: {}]
  %s1 = inlined_call_operand.hbm [shape: bf16[16,32], index: 1, kind: input, shape index: {}]
  %s2 = inlined_call_operand.hbm [shape: bf16[32,32], index: 2, kind: input, shape index: {}]
  %s3 = inlined_call_operand.vmem [shape: f32[1,32], index: 3, kind: input, shape index: {}]
  %s4 = inlined_call_operand.hbm [shape: f32[16,32], index: 4, kind: output, shape index: {0}]
  %s5 = inlined_call_operand.hbm [shape: f32[16,32], index: 5, kind: output, shape index: {1}]
  %6 = xla_tuple %s4, %s5
  %s7 = sld [smem:[#allocation0]]
  $region50: #{tpu_custom_call.1} parent=0
    _
  %s9 = ssub.s32 1, %s7
  %s10 = scalar_select 0, %s9, %s7
  $region1: #{tpu_custom_call.1} parent=0
    #allocation2 [shape = 'u8[4096]{0}', space=vmem, size = 0x1000, scoped, tag = 'input window, operand 0, single buffered']
    #allocation3 [shape = 's32[1]{0}', space=sflag, size = 0x4, scoped, tag = 'scoped memory for tpu_custom_call.1']
    #allocation4 [shape = 's32[1]{0}', space=sflag, size = 0x4, scoped, tag = 'scoped memory for tpu_custom_call.1']
    #allocation5 [shape = 'u8[4096]{0}', space=vmem, size = 0x1000, scoped, tag = 'input window, operand 1, single buffered']
    #allocation6 [shape = 's32[1]{0}', space=sflag, size = 0x4, scoped, tag = 'scoped memory for tpu_custom_call.1']
    #allocation7 [shape = 'u8[8192]{0}', space=vmem, size = 0x2000, scoped, tag = 'input window, operand 2, single buffered']
    #allocation8 [shape = 'u8[8192]{0}', space=vmem, size = 0x2000, scoped, tag = 'output window, operand 0, single buffered']
    #allocation9 [shape = 'u8[8192]{0}', space=vmem, size = 0x2000, scoped, tag = 'output window, operand 1, single buffered']
    #allocation10 [shape = 's32[1]{0}', space=sflag, size = 0x4, scoped, tag = 'scoped memory for tpu_custom_call.1']
    %11 = vsyncpa [#allocation3], 0
    %12 = vsyncpa [#allocation6], 0
    %13 = vsyncpa [#allocation4], 0
    %14 = vsyncpa [#allocation10], 0
    // Predicated region
    $region2: #{tpu_custom_call.1} parent=1 // pred_check
      _
    $region3: #{tpu_custom_call.1} parent=1 // pred_check_branch
      %16 = sbr.rel (0) target = $region5
    $region4: #{tpu_custom_call.1} parent=1 // pred_region
      %s18 = ssub.s32 128, 128
      %19 = vsyncadd [#allocation3], %s18
      %s20 = sshll.u32 [#allocation2], 4
      %s21 = int_to_ptr.vmem [resolvable:$true] %s20
      %26 = dma.hbm_to_vmem [thread:$0]  %s0, 128, %s21, [#allocation3], 64, 64, 4
    $region5: #{tpu_custom_call.1} parent=1 // pred_fallthru
      _
    // Predicated region
    $region6: #{tpu_custom_call.1} parent=1 // pred_check
      _
    $region7: #{tpu_custom_call.1} parent=1 // pred_check_branch
      %28 = sbr.rel (0) target = $region9
    $region8: #{tpu_custom_call.1} parent=1 // pred_region
      %s30 = ssub.s32 128, 128
      %31 = vsyncadd [#allocation6], %s30
      %s32 = sshll.u32 [#allocation5], 4
      %s33 = int_to_ptr.vmem [resolvable:$true] %s32
      %38 = dma.hbm_to_vmem [thread:$0]  %s1, 128, %s33, [#allocation6], 64, 64, 4
    $region9: #{tpu_custom_call.1} parent=1 // pred_fallthru
      _
    // Predicated region
    $region10: #{tpu_custom_call.1} parent=1 // pred_check
      _
    $region11: #{tpu_custom_call.1} parent=1 // pred_check_branch
      %40 = sbr.rel (0) target = $region13
    $region12: #{tpu_custom_call.1} parent=1 // pred_region
      %s42 = ssub.s32 256, 256
      %43 = vsyncadd [#allocation6], %s42
      %s44 = sshll.u32 [#allocation7], 4
      %s45 = int_to_ptr.vmem [resolvable:$true] %s44
      %50 = dma.hbm_to_vmem [thread:$0]  %s2, 256, %s45, [#allocation6], 64, 64, 4
    $region13: #{tpu_custom_call.1} parent=1 // pred_fallthru
      _
    // Predicated region
    $region14: #{tpu_custom_call.1} parent=1 // pred_check
      _
    $region15: #{tpu_custom_call.1} parent=1 // pred_check_branch
      %52 = sbr.rel (0) target = $region17
    $region16: #{tpu_custom_call.1} parent=1 // pred_region
      _
    $region17: #{tpu_custom_call.1} parent=1 // pred_fallthru
      _
    // Predicated region
    $region18: #{tpu_custom_call.1} parent=1 // pred_check
      _
    $region19: #{tpu_custom_call.1} parent=1 // pred_check_branch
      %54 = sbr.rel (0) target = $region21
    $region20: #{tpu_custom_call.1} parent=1 // pred_region
      %55 = dma.done [#allocation3], 128
    $region21: #{tpu_custom_call.1} parent=1 // pred_fallthru
      _
    // Predicated region
    $region22: #{tpu_custom_call.1} parent=1 // pred_check
      _
    $region23: #{tpu_custom_call.1} parent=1 // pred_check_branch
      %57 = sbr.rel (0) target = $region25
    $region24: #{tpu_custom_call.1} parent=1 // pred_region
      %58 = dma.done [#allocation6], 128
    $region25: #{tpu_custom_call.1} parent=1 // pred_fallthru
      _
    // Predicated region
    $region26: #{tpu_custom_call.1} parent=1 // pred_check
      _
    $region27: #{tpu_custom_call.1} parent=1 // pred_check_branch
      %60 = sbr.rel (0) target = $region29
    $region28: #{tpu_custom_call.1} parent=1 // pred_region
      %61 = dma.done [#allocation6], 256
    $region29: #{tpu_custom_call.1} parent=1 // pred_fallthru
      _
    %p63 = scmp.eq.s32.totalorder 0, 0
    // Predicated region
    $region30: #{tpu_custom_call.1} parent=1 // pred_check
      %p64 = pneg %p63
    $region31: #{tpu_custom_call.1} parent=1 // pred_check_branch
      %66 = sbr.rel (%p64) target = $region33
    $region32: #{tpu_custom_call.1} parent=1 // pred_region
      %v67 = vld [vmem:[%s3] sm:$0x1]
      %v69 = vlaneseq
      %v70 = vshrl.u32 %v69, 7
      %v71 = vsub.s32 0, %v70
      %v72 = vrot.slane %v67, %v71
      %vm74 = vcmask 261120
      %75 = vst.msk [vmem:[#allocation8] sm:$0xff] %vm74, %v72
      %76 = vst.msk [vmem:[#allocation8 + $0x8] sm:$0xff] %vm74, %v72
      %77 = vst.msk [vmem:[#allocation9] sm:$0xff] %vm74, 0.0
      %78 = vst.msk [vmem:[#allocation9 + $0x8] sm:$0xff] %vm74, 0.0
    $region33: #{tpu_custom_call.1} parent=1 // pred_fallthru
      _
    %v79 = vld [vmem:[#allocation2] sm:$0xf]
    %v80 = vld [vmem:[#allocation2 + $0x4] sm:$0xf]
    %v81 = vld [vmem:[#allocation5] sm:$0xf]
    %v82 = vld [vmem:[#allocation5 + $0x4] sm:$0xf]
    %v83 = vld [vmem:[#allocation7] sm:$0xf]
    %v84 = vld [vmem:[#allocation7 + $0x4] sm:$0xf]
    %v85 = vld [vmem:[#allocation7 + $0x8] sm:$0xf]
    %v86 = vld [vmem:[#allocation7 + $0xc] sm:$0xf]
    %v87 = vld [vmem:[#allocation8] sm:$0xff]
    %v88 = vld [vmem:[#allocation8 + $0x8] sm:$0xff]
    %v91 = vunpack.c.l.b16 %v79
    %v92 = vunpack.c.l.b16 %v80
    %v93 = vpack.c.b16 %v92, %v91
    %v98 = vunpack.c.l.b16 %v83
    %v99 = vunpack.c.l.b16 %v84
    %v100 = vunpack.c.l.b16 %v85
    %v101 = vunpack.c.l.b16 %v86
    %v102 = vpack.c.b16 %v99, %v98
    %v103 = vpack.c.b16 %v101, %v100
    %vm104 = vcmask 261120
    %v106 = vsel %vm104, %v93, 0
    %v109 = vsel %vm104, %v102, 0
    %v112 = vsel %vm104, %v103, 0
    %114 = vmatprep.subr.bf16.mxu0 0
    %115 = vmatpush1.bf16.xpose.msra.mxu0 0
    %116 = vmatprep.subr.bf16.mxu0 0
    %117 = vmatpush1.bf16.xpose.msra.mxu0 0
    %118 = vmatprep.subr.bf16.mxu0 0
    %119 = vmatpush1.bf16.xpose.msra.mxu0 0
    %120 = vmatprep.subr.bf16.mxu0 0
    %121 = vmatpush1.bf16.xpose.msra.mxu0 0
    %122 = vmatprep.subr.bf16.mxu0 0
    %123 = vmatpush1.bf16.xpose.msra.mxu0 0
    %124 = vmatprep.subr.bf16.mxu0 0
    %125 = vmatpush1.bf16.xpose.msra.mxu0 0
    %126 = vmatprep.subr.bf16.mxu0 0
    %127 = vmatpush1.bf16.xpose.msra.mxu0 %v112
    %128 = vmatprep.subr.bf16.mxu0 0
    %129 = vmatpush1.bf16.xpose.msra.mxu0 %v109
    %130 = vmatprep.subr.bf16.mxu0 0
    %131 = vmatpush2.bf16.xpose.msra.mxu0 0
    %132 = vmatprep.subr.bf16.mxu0 0
    %133 = vmatpush2.bf16.xpose.msra.mxu0 0
    %134 = vmatprep.subr.bf16.mxu0 0
    %135 = vmatpush2.bf16.xpose.msra.mxu0 0
    %136 = vmatprep.subr.bf16.mxu0 0
    %137 = vmatpush2.bf16.xpose.msra.mxu0 0
    %138 = vmatprep.subr.bf16.mxu0 0
    %139 = vmatpush2.bf16.xpose.msra.mxu0 0
    %140 = vmatprep.subr.bf16.mxu0 0
    %141 = vmatpush2.bf16.xpose.msra.mxu0 0
    %142 = vmatprep.subr.bf16.mxu0 0
    %143 = vmatpush2.bf16.xpose.msra.mxu0 0
    %144 = vmatprep.subr.bf16.mxu0 0
    %145 = vmatpush2.bf16.xpose.msra.mxu0 0
    %146 = vmatprep.mubr.bf16.mxu0 0
    %147 = vmatmul.mubr.bf16.gmra.mxu0 %v106
    %v148 = vpop.f32.mrf.mxu0
    %v149 = vadd.f32 0.0, %v148
    %v150 = vpop.f32.mrf.mxu0
    %v151 = vpop.f32.mrf.mxu0
    %v152 = vadd.f32 0.0, %v151
    %v153 = vpop.f32.mrf.mxu0
    %154 = vdwg.mxu0
    %v155 = vadd.f32 %v87, %v149
    %v156 = vadd.f32 %v88, %v152
    %157 = vst.msk [vmem:[#allocation8] sm:$0xff] %vm104, %v155
    %158 = vst.msk [vmem:[#allocation8 + $0x8] sm:$0xff] %vm104, %v156
    %v159 = vld [vmem:[#allocation9] sm:$0xff]
    %v160 = vld [vmem:[#allocation9 + $0x8] sm:$0xff]
    %v161 = vmul.bf16 %v83, %v83
    %v162 = vmul.bf16 %v84, %v84
    %v163 = vmul.bf16 %v85, %v85
    %v164 = vmul.bf16 %v86, %v86
    %v167 = vunpack.c.l.b16 %v81
    %v168 = vunpack.c.l.b16 %v82
    %v169 = vpack.c.b16 %v168, %v167
    %v174 = vunpack.c.l.b16 %v161
    %v175 = vunpack.c.l.b16 %v162
    %v176 = vunpack.c.l.b16 %v163
    %v177 = vunpack.c.l.b16 %v164
    %v178 = vpack.c.b16 %v175, %v174
    %v179 = vpack.c.b16 %v177, %v176
    %v181 = vsel %vm104, %v169, 0
    %v184 = vsel %vm104, %v178, 0
    %v187 = vsel %vm104, %v179, 0
    %189 = vmatprep.subr.bf16.mxu0 0
    %190 = vmatpush1.bf16.xpose.msra.mxu0 0
    %191 = vmatprep.subr.bf16.mxu0 0
    %192 = vmatpush1.bf16.xpose.msra.mxu0 0
    %193 = vmatprep.subr.bf16.mxu0 0
    %194 = vmatpush1.bf16.xpose.msra.mxu0 0
    %195 = vmatprep.subr.bf16.mxu0 0
    %196 = vmatpush1.bf16.xpose.msra.mxu0 0
    %197 = vmatprep.subr.bf16.mxu0 0
    %198 = vmatpush1.bf16.xpose.msra.mxu0 0
    %199 = vmatprep.subr.bf16.mxu0 0
    %200 = vmatpush1.bf16.xpose.msra.mxu0 0
    %201 = vmatprep.subr.bf16.mxu0 0
    %202 = vmatpush1.bf16.xpose.msra.mxu0 %v187
    %203 = vmatprep.subr.bf16.mxu0 0
    %204 = vmatpush1.bf16.xpose.msra.mxu0 %v184
    %205 = vmatprep.subr.bf16.mxu0 0
    %206 = vmatpush2.bf16.xpose.msra.mxu0 0
    %207 = vmatprep.subr.bf16.mxu0 0
    %208 = vmatpush2.bf16.xpose.msra.mxu0 0
    %209 = vmatprep.subr.bf16.mxu0 0
    %210 = vmatpush2.bf16.xpose.msra.mxu0 0
    %211 = vmatprep.subr.bf16.mxu0 0
    %212 = vmatpush2.bf16.xpose.msra.mxu0 0
    %213 = vmatprep.subr.bf16.mxu0 0
    %214 = vmatpush2.bf16.xpose.msra.mxu0 0
    %215 = vmatprep.subr.bf16.mxu0 0
    %216 = vmatpush2.bf16.xpose.msra.mxu0 0
    %217 = vmatprep.subr.bf16.mxu0 0
    %218 = vmatpush2.bf16.xpose.msra.mxu0 0
    %219 = vmatprep.subr.bf16.mxu0 0
    %220 = vmatpush2.bf16.xpose.msra.mxu0 0
    %221 = vmatprep.mubr.bf16.mxu0 0
    %222 = vmatmul.mubr.bf16.gmra.mxu0 %v181
    %v223 = vpop.f32.mrf.mxu0
    %v224 = vadd.f32 0.0, %v223
    %v225 = vpop.f32.mrf.mxu0
    %v226 = vpop.f32.mrf.mxu0
    %v227 = vadd.f32 0.0, %v226
    %v228 = vpop.f32.mrf.mxu0
    %229 = vdwg.mxu0
    %v230 = vadd.f32 %v159, %v224
    %v231 = vadd.f32 %v160, %v227
    %232 = vst.msk [vmem:[#allocation9] sm:$0xff] %vm104, %v230
    %233 = vst.msk [vmem:[#allocation9 + $0x8] sm:$0xff] %vm104, %v231
    // Predicated region
    $region34: #{tpu_custom_call.1} parent=1 // pred_check
      _
    $region35: #{tpu_custom_call.1} parent=1 // pred_check_branch
      %235 = sbr.rel (0) target = $region37
    $region36: #{tpu_custom_call.1} parent=1 // pred_region
      %s237 = ssub.s32 256, 256
      %238 = vsyncadd [#allocation4], %s237
      %s239 = sshll.u32 [#allocation8], 4
      %s240 = int_to_ptr.vmem [resolvable:$true] %s239
      %245 = dma.vmem_to_hbm [thread:$0]  %s240, 256, %s4, [#allocation4], 128, 128, 8
    $region37: #{tpu_custom_call.1} parent=1 // pred_fallthru
      _
    // Predicated region
    $region38: #{tpu_custom_call.1} parent=1 // pred_check
      _
    $region39: #{tpu_custom_call.1} parent=1 // pred_check_branch
      %247 = sbr.rel (0) target = $region41
    $region40: #{tpu_custom_call.1} parent=1 // pred_region
      %s249 = ssub.s32 256, 256
      %250 = vsyncadd [#allocation10], %s249
      %s251 = sshll.u32 [#allocation9], 4
      %s252 = int_to_ptr.vmem [resolvable:$true] %s251
      %257 = dma.vmem_to_hbm [thread:$0]  %s252, 256, %s5, [#allocation10], 128, 128, 8
    $region41: #{tpu_custom_call.1} parent=1 // pred_fallthru
      _
    // Predicated region
    $region42: #{tpu_custom_call.1} parent=1 // pred_check
      _
    $region43: #{tpu_custom_call.1} parent=1 // pred_check_branch
      %259 = sbr.rel (0) target = $region45
    $region44: #{tpu_custom_call.1} parent=1 // pred_region
      %260 = dma.done [#allocation4], 256
    $region45: #{tpu_custom_call.1} parent=1 // pred_fallthru
      _
    // Predicated region
    $region46: #{tpu_custom_call.1} parent=1 // pred_check
      _
    $region47: #{tpu_custom_call.1} parent=1 // pred_check_branch
      %262 = sbr.rel (0) target = $region49
    $region48: #{tpu_custom_call.1} parent=1 // pred_region
      %263 = dma.done [#allocation10], 256
    $region49: #{tpu_custom_call.1} parent=1 // pred_fallthru
      _
    %264 = vsyncpa [#allocation3], 1
    %265 = vsyncpa [#allocation6], 1
    %266 = vsyncpa [#allocation4], 1
    %267 = vsyncpa [#allocation10], 1

</llo_original>
